<compile_context>
chip_gen: v6e
topology: v6e:2x2x1
jax: 0.10.0
libtpu: 0.0.40
codegen_flags: <defaults>
</compile_context>

<pallas_src>
import jax
import jax.numpy as jnp
from jax.experimental import pallas as pl
from jax.experimental.pallas import tpu as pltpu


def _argmax_kernel(logits_ref, ids_ref):
    # logits_ref: [V, T]  (V=5 on sublanes, T tokens on lanes, T % 128 == 0)
    # ids_ref   : [1, T]  int32
    V = logits_ref.shape[0]
    x = logits_ref[...]                                   # native dtype (bf16 ok)

    best_val = x[0:1, :]                                  # [1, T]
    best_idx = jnp.zeros(ids_ref.shape, dtype=jnp.int32)  # [1, T]
    for v in range(1, V):                                 # static unroll, V=5
        xv = x[v : v + 1, :]
        take = xv > best_val                              # strict > => first-index ties
        best_val = jnp.where(take, xv, best_val)
        best_idx = jnp.where(take, jnp.int32(v), best_idx)

    ids_ref[...] = best_idx


def mpra_postprocess(logits, tokens_per_tile=8192):
    """logits: [B, S, V] float -> nt_ids: [B, S] int32 (argmax over vocab)."""
    B, S, V = logits.shape
    N = B * S

    # Lane-dense relayout: tokens on the 128-lane axis, vocab (5) on sublanes.
    # TODO(synk): in a real deployment the producer should emit logits already
    # as [V, N] (or fuse this argmax into its epilogue) to avoid the XLA
    # transpose + extra HBM round trip of the [B,S,V] logits here.
    x = jnp.transpose(logits.reshape(N, V), (1, 0))       # [V, N]

    n_lanes = pl.cdiv(N, 128) * 128                       # lane-align token count
    tile = min(int(tokens_per_tile), int(n_lanes))        # multiple of 128
    n_pad = pl.cdiv(N, tile) * tile
    if n_pad != N:
        x = jnp.pad(x, ((0, 0), (0, n_pad - N)))

    grid = (n_pad // tile,)
    ids = pl.pallas_call(
        _argmax_kernel,
        out_shape=jax.ShapeDtypeStruct((1, n_pad), jnp.int32),
        grid=grid,
        in_specs=[pl.BlockSpec((V, tile), lambda i: (0, i))],
        out_specs=pl.BlockSpec((1, tile), lambda i: (0, i)),
        compiler_params=pltpu.CompilerParams(
            dimension_semantics=("parallel",)),
    )(x)

    return ids[0, :N].reshape(B, S)


def decode_sequence(nt_ids):
    # Host-side string decoding (no tensor compute; not a kernel candidate).
    nt_map = {0: 'A', 1: 'C', 2: 'G', 3: 'T', 4: 'N'}
    sequences = []
    for row in jax.device_get(nt_ids):
        sequences.append(''.join(nt_map[int(i)] for i in row))
    return sequences


if __name__ == "__main__":
    key = jax.random.PRNGKey(0)

    # Small shape matching the module: batch=2, seq=8, vocab=5 (A/C/G/T/N).
    B, S, V = 2, 8, 5
    logits = jax.random.normal(key, (B, S, V), dtype=jnp.float32)
    nt_ids = mpra_postprocess(logits)
    jax.block_until_ready(nt_ids)

    # Reference: softmax is monotone, so argmax over probs == argmax over logits.
    ref = jnp.argmax(jax.nn.softmax(logits, axis=-1), axis=-1).astype(jnp.int32)
    assert jnp.array_equal(nt_ids, ref), (nt_ids, ref)

    # Larger ragged shape exercising padding + multi-tile grid, in bf16.
    key2 = jax.random.PRNGKey(1)
    B2, S2 = 4, 300
    logits2 = jax.random.normal(key2, (B2, S2, V), dtype=jnp.bfloat16)
    nt_ids2 = mpra_postprocess(logits2, tokens_per_tile=256)
    jax.block_until_ready(nt_ids2)
    ref2 = jnp.argmax(logits2, axis=-1).astype(jnp.int32)
    assert jnp.array_equal(nt_ids2, ref2), (nt_ids2, ref2)

    _ = decode_sequence(nt_ids)  # exercise the string decode path too
    print("KERNEL_OK")
</pallas_src>

<mosaic_0001>
module attributes {stable_mosaic.version = 11 : i64} {
  func.func @_argmax_kernel(%arg0: i32, %arg1: memref<5x128xf32, #tpu.memory_space<vmem>>, %arg2: memref<1x128xi32, #tpu.memory_space<vmem>>) attributes {dimension_semantics = [#tpu.dimension_semantics<parallel>], iteration_bounds = array<i64: 1>, scalar_prefetch = 0 : i64, scratch_operands = 0 : i64, tpu.core_type = #tpu.core_type<tc>, window_params = [{transform_indices = @transform_0, window_bounds = array<i64: 5, 128>}, {transform_indices = @transform_1, window_bounds = array<i64: 1, 128>}]} {
    %c0 = arith.constant 0 : index
    %c0_0 = arith.constant 0 : index
    %0 = vector.load %arg1[%c0, %c0_0] : memref<5x128xf32, #tpu.memory_space<vmem>>, vector<5x128xf32>
    %1 = vector.extract_strided_slice %0 {offsets = [0, 0], sizes = [1, 128], strides = [1, 1]} : vector<5x128xf32> to vector<1x128xf32>
    %c0_i32 = arith.constant 0 : i32
    %2 = vector.broadcast %c0_i32 : i32 to vector<1x128xi32>
    %3 = vector.extract_strided_slice %0 {offsets = [1, 0], sizes = [1, 128], strides = [1, 1]} : vector<5x128xf32> to vector<1x128xf32>
    %4 = arith.cmpf ogt, %3, %1 : vector<1x128xf32>
    %5 = arith.select %4, %3, %1 : vector<1x128xi1>, vector<1x128xf32>
    %c1_i32 = arith.constant 1 : i32
    %6 = vector.broadcast %c1_i32 : i32 to vector<1x128xi32>
    %7 = arith.select %4, %6, %2 : vector<1x128xi1>, vector<1x128xi32>
    %8 = vector.extract_strided_slice %0 {offsets = [2, 0], sizes = [1, 128], strides = [1, 1]} : vector<5x128xf32> to vector<1x128xf32>
    %9 = arith.cmpf ogt, %8, %5 : vector<1x128xf32>
    %10 = arith.select %9, %8, %5 : vector<1x128xi1>, vector<1x128xf32>
    %c2_i32 = arith.constant 2 : i32
    %11 = vector.broadcast %c2_i32 : i32 to vector<1x128xi32>
    %12 = arith.select %9, %11, %7 : vector<1x128xi1>, vector<1x128xi32>
    %13 = vector.extract_strided_slice %0 {offsets = [3, 0], sizes = [1, 128], strides = [1, 1]} : vector<5x128xf32> to vector<1x128xf32>
    %14 = arith.cmpf ogt, %13, %10 : vector<1x128xf32>
    %15 = arith.select %14, %13, %10 : vector<1x128xi1>, vector<1x128xf32>
    %c3_i32 = arith.constant 3 : i32
    %16 = vector.broadcast %c3_i32 : i32 to vector<1x128xi32>
    %17 = arith.select %14, %16, %12 : vector<1x128xi1>, vector<1x128xi32>
    %18 = vector.extract_strided_slice %0 {offsets = [4, 0], sizes = [1, 128], strides = [1, 1]} : vector<5x128xf32> to vector<1x128xf32>
    %19 = arith.cmpf ogt, %18, %15 : vector<1x128xf32>
    %c4_i32 = arith.constant 4 : i32
    %20 = vector.broadcast %c4_i32 : i32 to vector<1x128xi32>
    %21 = arith.select %19, %20, %17 : vector<1x128xi1>, vector<1x128xi32>
    %c0_1 = arith.constant 0 : index
    %c0_2 = arith.constant 0 : index
    %22 = vector.load %arg2[%c0_1, %c0_2] : memref<1x128xi32, #tpu.memory_space<vmem>>, vector<1x128xi32>
    tpu.vector_store %arg2[%c0_1, %c0_2], %21 {strides = array<i32>} : memref<1x128xi32, #tpu.memory_space<vmem>>, vector<1x128xi32>,
    return
  }
  func.func @transform_0(%arg0: i32) -> (i32, i32) {
    %c0_i32 = arith.constant 0 : i32
    %c0_i32_0 = arith.constant 0 : i32
    return %c0_i32, %arg0 : i32, i32
  }
  func.func @transform_1(%arg0: i32) -> (i32, i32) {
    %c0_i32 = arith.constant 0 : i32
    %c0_i32_0 = arith.constant 0 : i32
    return %c0_i32, %arg0 : i32, i32
  }
}

</mosaic_0001>

<llo_original>
// kernel: tpu_custom_call.1
$region0: #{tpu_custom_call.1}
  #allocation0 [shape = 'u32[]', space=smem, size = 0x4, offset = 0x4, fixed_abs, tag = 'smem constant byte address 0x4 - core index']
  #allocation1 [shape = 'u32[144,128]{1,0:T(1,128)}', space=vmem, size = 0x12000, scoped, tag = 'internal scratch']
  %s0 = inlined_call_operand.hbm [shape: f32[5,128], index: 0, kind: input, shape index: {}]
  %s1 = inlined_call_operand.hbm [shape: s32[1,128], index: 1, kind: output, shape index: {}]
  %s2 = sld [smem:[#allocation0]]
  $region18: #{tpu_custom_call.1} parent=0
    _
  %s4 = ssub.s32 1, %s2
  %s5 = scalar_select 0, %s4, %s2
  $region1: #{tpu_custom_call.1} parent=0
    #allocation2 [shape = 'u8[4096]{0}', space=vmem, size = 0x1000, scoped, tag = 'input window, operand 0, single buffered']
    #allocation3 [shape = 's32[1]{0}', space=sflag, size = 0x4, scoped, tag = 'scoped memory for tpu_custom_call.1']
    #allocation4 [shape = 's32[1]{0}', space=sflag, size = 0x4, scoped, tag = 'scoped memory for tpu_custom_call.1']
    #allocation5 [shape = 'u8[512]{0}', space=vmem, size = 0x400, scoped, tag = 'output window, operand 0, single buffered']
    %6 = vsyncpa [#allocation3], 0
    %7 = vsyncpa [#allocation4], 0
    // Predicated region
    $region2: #{tpu_custom_call.1} parent=1 // pred_check
      _
    $region3: #{tpu_custom_call.1} parent=1 // pred_check_branch
      %9 = sbr.rel (0) target = $region5
    $region4: #{tpu_custom_call.1} parent=1 // pred_region
      %s11 = ssub.s32 128, 128
      %12 = vsyncadd [#allocation3], %s11
      %s14 = sshll.u32 [#allocation2], 4
      %s15 = int_to_ptr.vmem [resolvable:$true] %s14
      %17 = dma.hbm_to_vmem [thread:$0]  %s0, 128, %s15, [#allocation3]
    $region5: #{tpu_custom_call.1} parent=1 // pred_fallthru
      _
    // Predicated region
    $region6: #{tpu_custom_call.1} parent=1 // pred_check
      _
    $region7: #{tpu_custom_call.1} parent=1 // pred_check_branch
      %19 = sbr.rel (0) target = $region9
    $region8: #{tpu_custom_call.1} parent=1 // pred_region
      %20 = dma.done [#allocation3], 128
    $region9: #{tpu_custom_call.1} parent=1 // pred_fallthru
      _
    %v21 = vld [vmem:[#allocation2] sm:$0x1f]
    %v23 = vrot.slane %v21, 7
    %vm25 = vcmp.gt.f32.partialorder %v21, %v23
    %v26 = vsel %vm25, %v21, %v23
    %v27 = vsel %vm25, 1, 0
    %v29 = vrot.slane %v26, 7
    %vm31 = vcmp.gt.f32.partialorder %v21, %v29
    %v32 = vsel %vm31, %v21, %v29
    %v33 = vrot.slane %v27, 7
    %v34 = vsel %vm31, 2, %v33
    %v36 = vrot.slane %v32, 7
    %vm38 = vcmp.gt.f32.partialorder %v21, %v36
    %v39 = vsel %vm38, %v21, %v36
    %v40 = vrot.slane %v34, 7
    %v41 = vsel %vm38, 3, %v40
    %v43 = vrot.slane %v39, 7
    %vm45 = vcmp.gt.f32.partialorder %v21, %v43
    %v46 = vrot.slane %v41, 7
    %v47 = vsel %vm45, 4, %v46
    %48 = vst [vmem:[#allocation5 - $0x4] sm:$0x10] %v47
    // Predicated region
    $region10: #{tpu_custom_call.1} parent=1 // pred_check
      _
    $region11: #{tpu_custom_call.1} parent=1 // pred_check_branch
      %50 = sbr.rel (0) target = $region13
    $region12: #{tpu_custom_call.1} parent=1 // pred_region
      %s52 = ssub.s32 16, 16
      %53 = vsyncadd [#allocation4], %s52
      %s55 = sshll.u32 [#allocation5], 4
      %s56 = int_to_ptr.vmem [resolvable:$true] %s55
      %58 = dma.vmem_to_hbm [thread:$0]  %s56, 16, %s1, [#allocation4]
    $region13: #{tpu_custom_call.1} parent=1 // pred_fallthru
      _
    // Predicated region
    $region14: #{tpu_custom_call.1} parent=1 // pred_check
      _
    $region15: #{tpu_custom_call.1} parent=1 // pred_check_branch
      %60 = sbr.rel (0) target = $region17
    $region16: #{tpu_custom_call.1} parent=1 // pred_region
      %61 = dma.done [#allocation4], 16
    $region17: #{tpu_custom_call.1} parent=1 // pred_fallthru
      _
    %62 = vsyncpa [#allocation3], 1
    %63 = vsyncpa [#allocation4], 1

</llo_original>
